<compile_context>
chip_gen: v7x
topology: tpu7x:2x2x1
jax: 0.10.0
libtpu: 0.0.40
codegen_flags: <defaults>
</compile_context>

<pallas_src>
import math
import functools

import jax
import jax.numpy as jnp
from jax.experimental import pallas as pl
from jax.experimental.pallas import tpu as pltpu


def _pe_add_kernel(pe_ref, x_ref, o_ref, *, batch: int):
    # pe_ref : (tile_l, D)    float32   (per-position sin/cos table block)
    # x_ref  : (tile_l, B*D)  x dtype
    # o_ref  : (tile_l, B*D)  x dtype
    pe = pe_ref[...]
    if batch > 1:
        # Column c of the flattened x slab is (b, d) = (c // D, c % D), so the
        # lane-tiled table (repeat along lanes B times) lines up exactly.
        pe = jnp.tile(pe, (1, batch))
    o_ref[...] = (x_ref[...].astype(jnp.float32) + pe).astype(o_ref.dtype)


def _make_pe_table(L: int, D: int) -> jax.Array:
    """Exactly the buffer the PyTorch module registers, truncated to L rows."""
    position = jnp.arange(L, dtype=jnp.float32)[:, None]                      # (L, 1)
    div_term = jnp.exp(jnp.arange(0, D, 2, dtype=jnp.float32)
                       * jnp.float32(-math.log(10000.0) / D))                 # (ceil(D/2),)
    pe = jnp.zeros((L, D), jnp.float32)
    pe = pe.at[:, 0::2].set(jnp.sin(position * div_term))
    pe = pe.at[:, 1::2].set(jnp.cos(position * div_term[: D // 2]))
    return pe


def _vmem_budget() -> tuple[int, int]:
    """(per-block byte budget for the x slab, vmem_limit_bytes) per generation."""
    try:
        vmem_cap = int(pltpu.get_tpu_info().vmem_capacity_bytes)
    except Exception:
        vmem_cap = 64 << 20  # conservative: assume v7x-sized VMEM per TC
    if vmem_cap >= (100 << 20):     # v5e / v6e: 128 MiB physical VMEM
        return 8 << 20, 80 << 20
    return 4 << 20, 48 << 20        # v7x: 64 MiB per TensorCore


def _choose_tile_l(L: int, row_bytes: int, tile_budget_bytes: int,
                   min_steps: int = 4) -> int:
    """Rows per block: byte-budget sized, multiple of 8, >= min_steps grid steps
    when L allows (>= 2 steps per TensorCore on the 2-TC v7x)."""
    if L <= 8:
        return L  # full-extent block satisfies the (8,128) rule directly
    tl = max(8, (tile_budget_bytes // max(row_bytes, 1)) // 8 * 8)
    if L >= min_steps * 8:
        per_step = pl.cdiv(L, min_steps)
        per_step = pl.cdiv(per_step, 8) * 8
        tl = min(tl, per_step)
    return min(tl, pl.cdiv(L, 8) * 8)


def sinusoidal_pe_add(x: jax.Array) -> jax.Array:
    """x: (L, B, D) -> x + PE[:L] broadcast over B (dropout = identity in eval)."""
    L, B, D = x.shape
    BD = B * D
    x2 = x.reshape(L, BD)            # lane-dense slab; column c = b*D + d
    pe = _make_pe_table(L, D)        # (L, D) float32

    itemsize = jnp.dtype(x.dtype).itemsize
    row_bytes = BD * itemsize
    tile_budget, vmem_limit = _vmem_budget()
    tile_l = _choose_tile_l(L, row_bytes, tile_budget)
    grid_l = pl.cdiv(L, tile_l)

    kernel = functools.partial(_pe_add_kernel, batch=B)

    cost = pl.CostEstimate(
        flops=L * BD,                                   # one add per element
        transcendentals=0,                              # PE table precomputed
        bytes_accessed=2 * L * BD * itemsize + L * D * 4,
    )

    out2 = pl.pallas_call(
        kernel,
        out_shape=jax.ShapeDtypeStruct((L, BD), x.dtype),
        grid_spec=pltpu.PrefetchScalarGridSpec(
            num_scalar_prefetch=0,
            grid=(grid_l,),
            in_specs=[
                pl.BlockSpec((tile_l, D), lambda i: (i, 0)),    # PE table block
                pl.BlockSpec((tile_l, BD), lambda i: (i, 0)),   # x tile
            ],
            out_specs=pl.BlockSpec((tile_l, BD), lambda i: (i, 0)),
        ),
        compiler_params=pltpu.CompilerParams(
            dimension_semantics=("parallel",),
            vmem_limit_bytes=vmem_limit,
        ),
        cost_estimate=cost,
        input_output_aliases={1: 0},   # donate the x slab (in-place when dead)
    )(pe, x2)

    return out2.reshape(L, B, D)


def _reference(x: jax.Array) -> jax.Array:
    """Plain-JAX mirror of the PyTorch module (eval mode, even d_model)."""
    L, B, D = x.shape
    pe = _make_pe_table(L, D)
    return x + pe[:, None, :].astype(x.dtype)   # broadcast over batch


if __name__ == "__main__":
    # Small shapes consistent with forward(): (L, B, d_model)
    L, B, D = 8, 2, 32
    key = jax.random.PRNGKey(0)
    x = jax.random.normal(key, (L, B, D), dtype=jnp.float32)

    ref = jax.block_until_ready(_reference(x))

    out = jax.block_until_ready(sinusoidal_pe_add(x))

    assert out.shape == (L, B, D) and out.dtype == x.dtype
    assert jnp.allclose(out, ref, atol=1e-5, rtol=1e-5), "mismatch vs reference"

    print("KERNEL_OK")
</pallas_src>

<mosaic_0001>
module attributes {stable_mosaic.version = 11 : i64} {
  func.func @_pe_add_kernel(%arg0: i32, %arg1: memref<8x32xf32, #tpu.memory_space<vmem>>, %arg2: memref<8x64xf32, #tpu.memory_space<vmem>>, %arg3: memref<8x64xf32, #tpu.memory_space<vmem>>) attributes {dimension_semantics = [#tpu.dimension_semantics<parallel>], iteration_bounds = array<i64: 1>, scalar_prefetch = 0 : i64, scratch_operands = 0 : i64, tpu.core_type = #tpu.core_type<tc>, window_params = [{transform_indices = @transform_0, window_bounds = array<i64: 8, 32>}, {transform_indices = @transform_1, window_bounds = array<i64: 8, 64>}, {transform_indices = @transform_2, window_bounds = array<i64: 8, 64>}]} {
    %c0 = arith.constant 0 : index
    %c0_0 = arith.constant 0 : index
    %0 = vector.load %arg1[%c0, %c0_0] : memref<8x32xf32, #tpu.memory_space<vmem>>, vector<8x32xf32>
    %1 = tpu.concatenate %0, %0 in 1 : vector<8x32xf32>, vector<8x32xf32> -> vector<8x64xf32>
    %c0_1 = arith.constant 0 : index
    %c0_2 = arith.constant 0 : index
    %2 = vector.load %arg2[%c0_1, %c0_2] : memref<8x64xf32, #tpu.memory_space<vmem>>, vector<8x64xf32>
    %3 = arith.addf %2, %1 : vector<8x64xf32>
    %c0_3 = arith.constant 0 : index
    %c0_4 = arith.constant 0 : index
    %4 = vector.load %arg3[%c0_3, %c0_4] : memref<8x64xf32, #tpu.memory_space<vmem>>, vector<8x64xf32>
    tpu.vector_store %arg3[%c0_3, %c0_4], %3 {strides = array<i32>} : memref<8x64xf32, #tpu.memory_space<vmem>>, vector<8x64xf32>,
    return
  }
  func.func @transform_0(%arg0: i32) -> (i32, i32) {
    %c0_i32 = arith.constant 0 : i32
    %c0_i32_0 = arith.constant 0 : i32
    return %arg0, %c0_i32 : i32, i32
  }
  func.func @transform_1(%arg0: i32) -> (i32, i32) {
    %c0_i32 = arith.constant 0 : i32
    %c0_i32_0 = arith.constant 0 : i32
    return %arg0, %c0_i32 : i32, i32
  }
  func.func @transform_2(%arg0: i32) -> (i32, i32) {
    %c0_i32 = arith.constant 0 : i32
    %c0_i32_0 = arith.constant 0 : i32
    return %arg0, %c0_i32 : i32, i32
  }
}

</mosaic_0001>

<llo_original>
// kernel: tpu_custom_call.1
$region0: #{tpu_custom_call.1}
  #allocation0 [shape = 'u32[]', space=smem, size = 0x4, offset = 0x4, fixed_abs, tag = 'smem constant byte address 0x4 - core index']
  #allocation1 [shape = 'u32[144,128]{1,0:T(1,128)}', space=vmem, size = 0x12000, scoped, tag = 'internal scratch']
  %s0 = inlined_call_operand.vmem [shape: f32[8,32], index: 0, kind: input, shape index: {}]
  %s1 = inlined_call_operand.hbm [shape: f32[8,64], index: 1, kind: input, shape index: {}, may-alias: {1,2}]
  %s2 = inlined_call_operand.hbm [shape: f32[8,64], index: 2, kind: output, shape index: {}, may-alias: {1,2}]
  %s3 = sld [smem:[#allocation0]]
  $region22: #{tpu_custom_call.1} parent=0
    _
  %s5 = ssub.s32 1, %s3
  %s6 = scalar_select 0, %s5, %s3
  $region1: #{tpu_custom_call.1} parent=0
    #allocation2 [shape = 'u8[4096]{0}', space=vmem, size = 0x1000, scoped, tag = 'input window, operand 1, single buffered']
    #allocation3 [shape = 's32[1]{0}', space=sflag, size = 0x4, scoped, tag = 'scoped memory for tpu_custom_call.1']
    #allocation4 [shape = 's32[1]{0}', space=sflag, size = 0x4, scoped, tag = 'scoped memory for tpu_custom_call.1']
    #allocation5 [shape = 'u8[4096]{0}', space=vmem, size = 0x1000, scoped, tag = 'output window, operand 0, single buffered']
    %7 = vsyncpa [#allocation3], 0
    %8 = vsyncpa [#allocation4], 0
    // Predicated region
    $region2: #{tpu_custom_call.1} parent=1 // pred_check
      _
    $region3: #{tpu_custom_call.1} parent=1 // pred_check_branch
      %10 = sbr.rel (0) target = $region5
    $region4: #{tpu_custom_call.1} parent=1 // pred_region
      _
    $region5: #{tpu_custom_call.1} parent=1 // pred_fallthru
      _
    // Predicated region
    $region6: #{tpu_custom_call.1} parent=1 // pred_check
      _
    $region7: #{tpu_custom_call.1} parent=1 // pred_check_branch
      %12 = sbr.rel (0) target = $region9
    $region8: #{tpu_custom_call.1} parent=1 // pred_region
      %s14 = ssub.s32 128, 128
      %15 = vsyncadd [#allocation3], %s14
      %s17 = sshll.u32 [#allocation2], 4
      %s18 = int_to_ptr.vmem [resolvable:$true] %s17
      %20 = dma.hbm_to_vmem [thread:$0]  %s1, 128, %s18, [#allocation3]
    $region9: #{tpu_custom_call.1} parent=1 // pred_fallthru
      _
    // Predicated region
    $region10: #{tpu_custom_call.1} parent=1 // pred_check
      _
    $region11: #{tpu_custom_call.1} parent=1 // pred_check_branch
      %22 = sbr.rel (0) target = $region13
    $region12: #{tpu_custom_call.1} parent=1 // pred_region
      %23 = dma.done [#allocation3], 128
    $region13: #{tpu_custom_call.1} parent=1 // pred_fallthru
      _
    %v24 = vld [vmem:[%s0] sm:$0xff]
    %26 = vrot.lane.b32.xlu0 %v24, 32
    %v27 = vpop.permute.xlu0 %26
    %vm29 = vcmask 261120
    %v30 = vsel %vm29, %v24, %v27
    %v31 = vld [vmem:[#allocation2] sm:$0xff]
    %v32 = vadd.f32 %v31, %v30
    %vm33 = vcmask 523264
    %34 = vst.msk [vmem:[#allocation5] sm:$0xff] %vm33, %v32
    // Predicated region
    $region14: #{tpu_custom_call.1} parent=1 // pred_check
      _
    $region15: #{tpu_custom_call.1} parent=1 // pred_check_branch
      %36 = sbr.rel (0) target = $region17
    $region16: #{tpu_custom_call.1} parent=1 // pred_region
      %s38 = ssub.s32 128, 128
      %39 = vsyncadd [#allocation4], %s38
      %s41 = sshll.u32 [#allocation5], 4
      %s42 = int_to_ptr.vmem [resolvable:$true] %s41
      %44 = dma.vmem_to_hbm [thread:$0]  %s42, 128, %s2, [#allocation4]
    $region17: #{tpu_custom_call.1} parent=1 // pred_fallthru
      _
    // Predicated region
    $region18: #{tpu_custom_call.1} parent=1 // pred_check
      _
    $region19: #{tpu_custom_call.1} parent=1 // pred_check_branch
      %46 = sbr.rel (0) target = $region21
    $region20: #{tpu_custom_call.1} parent=1 // pred_region
      %47 = dma.done [#allocation4], 128
    $region21: #{tpu_custom_call.1} parent=1 // pred_fallthru
      _
    %48 = vsyncpa [#allocation3], 1
    %49 = vsyncpa [#allocation4], 1

</llo_original>
